<compile_context>
chip_gen: v5e
topology: v5e:2x2
jax: 0.10.0
libtpu: 0.0.40
codegen_flags: <defaults>
</compile_context>

<pallas_src>
import functools

import jax
import jax.numpy as jnp
from jax.experimental import pallas as pl
from jax.experimental.pallas import tpu as pltpu

IN_DIM = 6
HIDDEN_DIMS = (128, 256)
LATENT_DIM = 64

# Lane-dense padded widths (last dim maps to the 128-lane axis).
IN_PAD = 128      # input features 6 -> 128 (zero rows in w1)
LATENT_PAD = 128  # latent 64 -> 128 (zero cols in w3/b3, zero rows in w4)
OUT_PAD = 128     # recon features 6 -> 128 (zero cols in w6/b6)

TILE_B_MAX = 1024  # batch tile; ~5 MiB live activations, fits every generation's scoped VMEM


def _round_up(x, m):
    return ((x + m - 1) // m) * m


def _ae_kernel(x_ref,
               w1_ref, b1_ref, w2_ref, b2_ref, w3_ref, b3_ref,   # encoder
               w4_ref, b4_ref, w5_ref, b5_ref, w6_ref, b6_ref,   # decoder
               recon_ref, z_ref):
    f32 = jnp.float32
    bf16 = jnp.bfloat16

    x = x_ref[...]                                                       # (TB, IN_PAD) bf16

    # ---- encoder ----
    h = jnp.dot(x, w1_ref[...], preferred_element_type=f32) + b1_ref[...]
    h = jnp.maximum(h, 0.0)
    h = jnp.dot(h.astype(bf16), w2_ref[...], preferred_element_type=f32) + b2_ref[...]
    h = jnp.maximum(h, 0.0)
    # padded latent columns are exactly zero (zero weight cols + zero bias cols)
    z = jnp.dot(h.astype(bf16), w3_ref[...], preferred_element_type=f32) + b3_ref[...]

    # ---- decoder ---- (no nonlinearity between z and the decoder's first linear)
    d = jnp.dot(z.astype(bf16), w4_ref[...], preferred_element_type=f32) + b4_ref[...]
    d = jnp.maximum(d, 0.0)
    d = jnp.dot(d.astype(bf16), w5_ref[...], preferred_element_type=f32) + b5_ref[...]
    d = jnp.maximum(d, 0.0)
    recon = jnp.dot(d.astype(bf16), w6_ref[...], preferred_element_type=f32) + b6_ref[...]

    recon_ref[...] = recon.astype(recon_ref.dtype)                       # (TB, OUT_PAD)
    z_ref[...] = z.astype(z_ref.dtype)                                   # (TB, LATENT_PAD)


def prepare_params(params):
    """Zero-pad narrow dims to lane width; cast weights to bf16 for the MXU."""
    w1, b1, w2, b2, w3, b3, w4, b4, w5, b5, w6, b6 = params
    f32, bf16 = jnp.float32, jnp.bfloat16

    w1p = jnp.zeros((IN_PAD, HIDDEN_DIMS[0]), f32).at[:IN_DIM, :].set(w1)
    w3p = jnp.zeros((HIDDEN_DIMS[1], LATENT_PAD), f32).at[:, :LATENT_DIM].set(w3)
    b3p = jnp.zeros((1, LATENT_PAD), f32).at[:, :LATENT_DIM].set(b3)
    w4p = jnp.zeros((LATENT_PAD, HIDDEN_DIMS[1]), f32).at[:LATENT_DIM, :].set(w4)
    w6p = jnp.zeros((HIDDEN_DIMS[0], OUT_PAD), f32).at[:, :IN_DIM].set(w6)
    b6p = jnp.zeros((1, OUT_PAD), f32).at[:, :IN_DIM].set(b6)

    return (w1p.astype(bf16), b1.astype(f32),
            w2.astype(bf16),  b2.astype(f32),
            w3p.astype(bf16), b3p,
            w4p.astype(bf16), b4.astype(f32),
            w5.astype(bf16),  b5.astype(f32),
            w6p.astype(bf16), b6p)


@functools.partial(jax.jit, static_argnames=("tile_b_max",))
def pose_autoencoder_forward(x, params, tile_b_max=TILE_B_MAX):
    """x: [B, IN_DIM] float32; params: flat tuple (w1,b1,...,w6,b6). Returns (recon, z)."""
    B = x.shape[0]
    padded = prepare_params(params)

    tile_b = min(tile_b_max, _round_up(B, 8))
    B_pad = _round_up(B, tile_b)

    x_pad = jnp.zeros((B_pad, IN_PAD), jnp.bfloat16)
    x_pad = x_pad.at[:B, :IN_DIM].set(x.astype(jnp.bfloat16))

    grid = (B_pad // tile_b,)
    batch_map = lambda i: (i, 0)
    const_map = lambda i: (0, 0)

    in_specs = [pl.BlockSpec((tile_b, IN_PAD), batch_map)]
    in_specs += [pl.BlockSpec(p.shape, const_map) for p in padded]

    out_specs = (
        pl.BlockSpec((tile_b, OUT_PAD), batch_map),
        pl.BlockSpec((tile_b, LATENT_PAD), batch_map),
    )

    flops = 2 * B_pad * (IN_PAD * HIDDEN_DIMS[0]
                         + HIDDEN_DIMS[0] * HIDDEN_DIMS[1]
                         + HIDDEN_DIMS[1] * LATENT_PAD
                         + LATENT_PAD * HIDDEN_DIMS[1]
                         + HIDDEN_DIMS[1] * HIDDEN_DIMS[0]
                         + HIDDEN_DIMS[0] * OUT_PAD)
    weight_bytes = sum(int(p.size) * p.dtype.itemsize for p in padded)
    bytes_accessed = int(x_pad.size) * 2 + B_pad * (OUT_PAD + LATENT_PAD) * 4 + weight_bytes

    fn = pl.pallas_call(
        _ae_kernel,
        grid=grid,
        out_shape=(
            jax.ShapeDtypeStruct((B_pad, OUT_PAD), jnp.float32),
            jax.ShapeDtypeStruct((B_pad, LATENT_PAD), jnp.float32),
        ),
        in_specs=in_specs,
        out_specs=out_specs,
        compiler_params=pltpu.CompilerParams(
            dimension_semantics=("parallel",),      # shard batch tiles across TCs on v7x
            vmem_limit_bytes=32 * 1024 * 1024,      # explicit budget; safe on v5e/v6e/v7x
        ),
        cost_estimate=pl.CostEstimate(
            flops=flops, transcendentals=0, bytes_accessed=bytes_accessed),
    )
    recon_pad, z_pad = fn(x_pad, *padded)
    return recon_pad[:B, :IN_DIM], z_pad[:B, :LATENT_DIM]


def init_params(key):
    """Deterministic synthetic params, PyTorch-Linear-like uniform init.

    Weights are stored as [in_features, out_features]; biases as [1, out]."""
    dims = [
        (IN_DIM, HIDDEN_DIMS[0]),          # enc L1
        (HIDDEN_DIMS[0], HIDDEN_DIMS[1]),  # enc L2
        (HIDDEN_DIMS[1], LATENT_DIM),      # enc L3
        (LATENT_DIM, HIDDEN_DIMS[1]),      # dec L1
        (HIDDEN_DIMS[1], HIDDEN_DIMS[0]),  # dec L2
        (HIDDEN_DIMS[0], IN_DIM),          # dec L3
    ]
    params = []
    for (fan_in, fan_out) in dims:
        key, kw, kb = jax.random.split(key, 3)
        bound = 1.0 / jnp.sqrt(jnp.float32(fan_in))
        w = jax.random.uniform(kw, (fan_in, fan_out), jnp.float32, -bound, bound)
        b = jax.random.uniform(kb, (1, fan_out), jnp.float32, -bound, bound)
        params += [w, b]
    return tuple(params)


def reference_forward(x, params):
    w1, b1, w2, b2, w3, b3, w4, b4, w5, b5, w6, b6 = params
    h = jnp.maximum(x @ w1 + b1, 0.0)
    h = jnp.maximum(h @ w2 + b2, 0.0)
    z = h @ w3 + b3
    d = jnp.maximum(z @ w4 + b4, 0.0)
    d = jnp.maximum(d @ w5 + b5, 0.0)
    recon = d @ w6 + b6
    return recon, z


if __name__ == "__main__":
    key = jax.random.PRNGKey(0)
    key, kx = jax.random.split(key)

    B = 8
    x = jax.random.normal(kx, (B, IN_DIM), jnp.float32)
    params = init_params(key)

    recon, z = pose_autoencoder_forward(x, params)
    recon = jax.block_until_ready(recon)
    z = jax.block_until_ready(z)

    # sanity check vs pure-JAX f32 reference (bf16 MXU inputs -> looser tolerance)
    recon_ref, z_ref = reference_forward(x, params)
    assert recon.shape == (B, IN_DIM) and z.shape == (B, LATENT_DIM)
    assert jnp.allclose(recon, recon_ref, atol=5e-2, rtol=5e-2), (
        float(jnp.max(jnp.abs(recon - recon_ref))))
    assert jnp.allclose(z, z_ref, atol=5e-2, rtol=5e-2), (
        float(jnp.max(jnp.abs(z - z_ref))))

    print("KERNEL_OK")
</pallas_src>

<mosaic_0001>
module attributes {stable_mosaic.version = 11 : i64} {
  func.func @_ae_kernel(%arg0: i32, %arg1: memref<8x128xbf16, #tpu.memory_space<vmem>>, %arg2: memref<128x128xbf16, #tpu.memory_space<vmem>>, %arg3: memref<1x128xf32, #tpu.memory_space<vmem>>, %arg4: memref<128x256xbf16, #tpu.memory_space<vmem>>, %arg5: memref<1x256xf32, #tpu.memory_space<vmem>>, %arg6: memref<256x128xbf16, #tpu.memory_space<vmem>>, %arg7: memref<1x128xf32, #tpu.memory_space<vmem>>, %arg8: memref<128x256xbf16, #tpu.memory_space<vmem>>, %arg9: memref<1x256xf32, #tpu.memory_space<vmem>>, %arg10: memref<256x128xbf16, #tpu.memory_space<vmem>>, %arg11: memref<1x128xf32, #tpu.memory_space<vmem>>, %arg12: memref<128x128xbf16, #tpu.memory_space<vmem>>, %arg13: memref<1x128xf32, #tpu.memory_space<vmem>>, %arg14: memref<8x128xf32, #tpu.memory_space<vmem>>, %arg15: memref<8x128xf32, #tpu.memory_space<vmem>>) attributes {dimension_semantics = [#tpu.dimension_semantics<parallel>], iteration_bounds = array<i64: 1>, scalar_prefetch = 0 : i64, scratch_operands = 0 : i64, tpu.core_type = #tpu.core_type<tc>, window_params = [{transform_indices = @transform_0, window_bounds = array<i64: 8, 128>}, {pipeline_mode = #tpu.pipeline_mode<synchronous>, transform_indices = @transform_1, window_bounds = array<i64: 128, 128>}, {pipeline_mode = #tpu.pipeline_mode<synchronous>, transform_indices = @transform_2, window_bounds = array<i64: 1, 128>}, {pipeline_mode = #tpu.pipeline_mode<synchronous>, transform_indices = @transform_3, window_bounds = array<i64: 128, 256>}, {pipeline_mode = #tpu.pipeline_mode<synchronous>, transform_indices = @transform_4, window_bounds = array<i64: 1, 256>}, {pipeline_mode = #tpu.pipeline_mode<synchronous>, transform_indices = @transform_5, window_bounds = array<i64: 256, 128>}, {pipeline_mode = #tpu.pipeline_mode<synchronous>, transform_indices = @transform_6, window_bounds = array<i64: 1, 128>}, {pipeline_mode = #tpu.pipeline_mode<synchronous>, transform_indices = @transform_7, window_bounds = array<i64: 128, 256>}, {pipeline_mode = #tpu.pipeline_mode<synchronous>, transform_indices = @transform_8, window_bounds = array<i64: 1, 256>}, {pipeline_mode = #tpu.pipeline_mode<synchronous>, transform_indices = @transform_9, window_bounds = array<i64: 256, 128>}, {pipeline_mode = #tpu.pipeline_mode<synchronous>, transform_indices = @transform_10, window_bounds = array<i64: 1, 128>}, {pipeline_mode = #tpu.pipeline_mode<synchronous>, transform_indices = @transform_11, window_bounds = array<i64: 128, 128>}, {pipeline_mode = #tpu.pipeline_mode<synchronous>, transform_indices = @transform_12, window_bounds = array<i64: 1, 128>}, {transform_indices = @transform_13, window_bounds = array<i64: 8, 128>}, {transform_indices = @transform_14, window_bounds = array<i64: 8, 128>}]} {
    %c0 = arith.constant 0 : index
    %c0_0 = arith.constant 0 : index
    %0 = vector.load %arg1[%c0, %c0_0] : memref<8x128xbf16, #tpu.memory_space<vmem>>, vector<8x128xbf16>
    %c0_1 = arith.constant 0 : index
    %c0_2 = arith.constant 0 : index
    %1 = vector.load %arg2[%c0_1, %c0_2] : memref<128x128xbf16, #tpu.memory_space<vmem>>, vector<128x128xbf16>
    %cst = arith.constant dense<0.000000e+00> : vector<8x128xf32>
    %2 = tpu.matmul %0, %1, %cst {dimension_numbers = #tpu.dot_dimension_numbers<[1], [0], [0], [1], [0, 0, 1, 1], [], []>} : vector<8x128xbf16>, vector<128x128xbf16>, vector<8x128xf32> -> vector<8x128xf32>
    %c0_3 = arith.constant 0 : index
    %c0_4 = arith.constant 0 : index
    %3 = vector.load %arg3[%c0_3, %c0_4] : memref<1x128xf32, #tpu.memory_space<vmem>>, vector<1x128xf32>
    %4 = vector.broadcast %3 : vector<1x128xf32> to vector<8x128xf32>
    %5 = arith.addf %2, %4 : vector<8x128xf32>
    %cst_5 = arith.constant 0.000000e+00 : f32
    %6 = vector.broadcast %cst_5 : f32 to vector<8x128xf32>
    %7 = arith.maximumf %5, %6 : vector<8x128xf32>
    %8 = arith.truncf %7 : vector<8x128xf32> to vector<8x128xbf16>
    %c0_6 = arith.constant 0 : index
    %c0_7 = arith.constant 0 : index
    %9 = vector.load %arg4[%c0_6, %c0_7] : memref<128x256xbf16, #tpu.memory_space<vmem>>, vector<128x256xbf16>
    %cst_8 = arith.constant dense<0.000000e+00> : vector<8x256xf32>
    %10 = tpu.matmul %8, %9, %cst_8 {dimension_numbers = #tpu.dot_dimension_numbers<[1], [0], [0], [1], [0, 0, 1, 1], [], []>} : vector<8x128xbf16>, vector<128x256xbf16>, vector<8x256xf32> -> vector<8x256xf32>
    %c0_9 = arith.constant 0 : index
    %c0_10 = arith.constant 0 : index
    %11 = vector.load %arg5[%c0_9, %c0_10] : memref<1x256xf32, #tpu.memory_space<vmem>>, vector<1x256xf32>
    %12 = vector.broadcast %11 : vector<1x256xf32> to vector<8x256xf32>
    %13 = arith.addf %10, %12 : vector<8x256xf32>
    %cst_11 = arith.constant 0.000000e+00 : f32
    %14 = vector.broadcast %cst_11 : f32 to vector<8x256xf32>
    %15 = arith.maximumf %13, %14 : vector<8x256xf32>
    %16 = arith.truncf %15 : vector<8x256xf32> to vector<8x256xbf16>
    %c0_12 = arith.constant 0 : index
    %c0_13 = arith.constant 0 : index
    %17 = vector.load %arg6[%c0_12, %c0_13] : memref<256x128xbf16, #tpu.memory_space<vmem>>, vector<256x128xbf16>
    %cst_14 = arith.constant dense<0.000000e+00> : vector<8x128xf32>
    %18 = tpu.matmul %16, %17, %cst_14 {dimension_numbers = #tpu.dot_dimension_numbers<[1], [0], [0], [1], [0, 0, 1, 1], [], []>} : vector<8x256xbf16>, vector<256x128xbf16>, vector<8x128xf32> -> vector<8x128xf32>
    %c0_15 = arith.constant 0 : index
    %c0_16 = arith.constant 0 : index
    %19 = vector.load %arg7[%c0_15, %c0_16] : memref<1x128xf32, #tpu.memory_space<vmem>>, vector<1x128xf32>
    %20 = vector.broadcast %19 : vector<1x128xf32> to vector<8x128xf32>
    %21 = arith.addf %18, %20 : vector<8x128xf32>
    %22 = arith.truncf %21 : vector<8x128xf32> to vector<8x128xbf16>
    %c0_17 = arith.constant 0 : index
    %c0_18 = arith.constant 0 : index
    %23 = vector.load %arg8[%c0_17, %c0_18] : memref<128x256xbf16, #tpu.memory_space<vmem>>, vector<128x256xbf16>
    %cst_19 = arith.constant dense<0.000000e+00> : vector<8x256xf32>
    %24 = tpu.matmul %22, %23, %cst_19 {dimension_numbers = #tpu.dot_dimension_numbers<[1], [0], [0], [1], [0, 0, 1, 1], [], []>} : vector<8x128xbf16>, vector<128x256xbf16>, vector<8x256xf32> -> vector<8x256xf32>
    %c0_20 = arith.constant 0 : index
    %c0_21 = arith.constant 0 : index
    %25 = vector.load %arg9[%c0_20, %c0_21] : memref<1x256xf32, #tpu.memory_space<vmem>>, vector<1x256xf32>
    %26 = vector.broadcast %25 : vector<1x256xf32> to vector<8x256xf32>
    %27 = arith.addf %24, %26 : vector<8x256xf32>
    %cst_22 = arith.constant 0.000000e+00 : f32
    %28 = vector.broadcast %cst_22 : f32 to vector<8x256xf32>
    %29 = arith.maximumf %27, %28 : vector<8x256xf32>
    %30 = arith.truncf %29 : vector<8x256xf32> to vector<8x256xbf16>
    %c0_23 = arith.constant 0 : index
    %c0_24 = arith.constant 0 : index
    %31 = vector.load %arg10[%c0_23, %c0_24] : memref<256x128xbf16, #tpu.memory_space<vmem>>, vector<256x128xbf16>
    %cst_25 = arith.constant dense<0.000000e+00> : vector<8x128xf32>
    %32 = tpu.matmul %30, %31, %cst_25 {dimension_numbers = #tpu.dot_dimension_numbers<[1], [0], [0], [1], [0, 0, 1, 1], [], []>} : vector<8x256xbf16>, vector<256x128xbf16>, vector<8x128xf32> -> vector<8x128xf32>
    %c0_26 = arith.constant 0 : index
    %c0_27 = arith.constant 0 : index
    %33 = vector.load %arg11[%c0_26, %c0_27] : memref<1x128xf32, #tpu.memory_space<vmem>>, vector<1x128xf32>
    %34 = vector.broadcast %33 : vector<1x128xf32> to vector<8x128xf32>
    %35 = arith.addf %32, %34 : vector<8x128xf32>
    %cst_28 = arith.constant 0.000000e+00 : f32
    %36 = vector.broadcast %cst_28 : f32 to vector<8x128xf32>
    %37 = arith.maximumf %35, %36 : vector<8x128xf32>
    %38 = arith.truncf %37 : vector<8x128xf32> to vector<8x128xbf16>
    %c0_29 = arith.constant 0 : index
    %c0_30 = arith.constant 0 : index
    %39 = vector.load %arg12[%c0_29, %c0_30] : memref<128x128xbf16, #tpu.memory_space<vmem>>, vector<128x128xbf16>
    %cst_31 = arith.constant dense<0.000000e+00> : vector<8x128xf32>
    %40 = tpu.matmul %38, %39, %cst_31 {dimension_numbers = #tpu.dot_dimension_numbers<[1], [0], [0], [1], [0, 0, 1, 1], [], []>} : vector<8x128xbf16>, vector<128x128xbf16>, vector<8x128xf32> -> vector<8x128xf32>
    %c0_32 = arith.constant 0 : index
    %c0_33 = arith.constant 0 : index
    %41 = vector.load %arg13[%c0_32, %c0_33] : memref<1x128xf32, #tpu.memory_space<vmem>>, vector<1x128xf32>
    %42 = vector.broadcast %41 : vector<1x128xf32> to vector<8x128xf32>
    %43 = arith.addf %40, %42 : vector<8x128xf32>
    %c0_34 = arith.constant 0 : index
    %c0_35 = arith.constant 0 : index
    %44 = vector.load %arg14[%c0_34, %c0_35] : memref<8x128xf32, #tpu.memory_space<vmem>>, vector<8x128xf32>
    tpu.vector_store %arg14[%c0_34, %c0_35], %43 {strides = array<i32>} : memref<8x128xf32, #tpu.memory_space<vmem>>, vector<8x128xf32>,
    %c0_36 = arith.constant 0 : index
    %c0_37 = arith.constant 0 : index
    %45 = vector.load %arg15[%c0_36, %c0_37] : memref<8x128xf32, #tpu.memory_space<vmem>>, vector<8x128xf32>
    tpu.vector_store %arg15[%c0_36, %c0_37], %21 {strides = array<i32>} : memref<8x128xf32, #tpu.memory_space<vmem>>, vector<8x128xf32>,
    return
  }
  func.func @transform_0(%arg0: i32) -> (i32, i32) {
    %c0_i32 = arith.constant 0 : i32
    %c0_i32_0 = arith.constant 0 : i32
    return %arg0, %c0_i32 : i32, i32
  }
  func.func @transform_1(%arg0: i32) -> (i32, i32) {
    %c0_i32 = arith.constant 0 : i32
    %c0_i32_0 = arith.constant 0 : i32
    %c0_i32_1 = arith.constant 0 : i32
    return %c0_i32, %c0_i32_0 : i32, i32
  }
  func.func @transform_2(%arg0: i32) -> (i32, i32) {
    %c0_i32 = arith.constant 0 : i32
    %c0_i32_0 = arith.constant 0 : i32
    %c0_i32_1 = arith.constant 0 : i32
    return %c0_i32, %c0_i32_0 : i32, i32
  }
  func.func @transform_3(%arg0: i32) -> (i32, i32) {
    %c0_i32 = arith.constant 0 : i32
    %c0_i32_0 = arith.constant 0 : i32
    %c0_i32_1 = arith.constant 0 : i32
    return %c0_i32, %c0_i32_0 : i32, i32
  }
  func.func @transform_4(%arg0: i32) -> (i32, i32) {
    %c0_i32 = arith.constant 0 : i32
    %c0_i32_0 = arith.constant 0 : i32
    %c0_i32_1 = arith.constant 0 : i32
    return %c0_i32, %c0_i32_0 : i32, i32
  }
  func.func @transform_5(%arg0: i32) -> (i32, i32) {
    %c0_i32 = arith.constant 0 : i32
    %c0_i32_0 = arith.constant 0 : i32
    %c0_i32_1 = arith.constant 0 : i32
    return %c0_i32, %c0_i32_0 : i32, i32
  }
  func.func @transform_6(%arg0: i32) -> (i32, i32) {
    %c0_i32 = arith.constant 0 : i32
    %c0_i32_0 = arith.constant 0 : i32
    %c0_i32_1 = arith.constant 0 : i32
    return %c0_i32, %c0_i32_0 : i32, i32
  }
  func.func @transform_7(%arg0: i32) -> (i32, i32) {
    %c0_i32 = arith.constant 0 : i32
    %c0_i32_0 = arith.constant 0 : i32
    %c0_i32_1 = arith.constant 0 : i32
    return %c0_i32, %c0_i32_0 : i32, i32
  }
  func.func @transform_8(%arg0: i32) -> (i32, i32) {
    %c0_i32 = arith.constant 0 : i32
    %c0_i32_0 = arith.constant 0 : i32
    %c0_i32_1 = arith.constant 0 : i32
    return %c0_i32, %c0_i32_0 : i32, i32
  }
  func.func @transform_9(%arg0: i32) -> (i32, i32) {
    %c0_i32 = arith.constant 0 : i32
    %c0_i32_0 = arith.constant 0 : i32
    %c0_i32_1 = arith.constant 0 : i32
    return %c0_i32, %c0_i32_0 : i32, i32
  }
  func.func @transform_10(%arg0: i32) -> (i32, i32) {
    %c0_i32 = arith.constant 0 : i32
    %c0_i32_0 = arith.constant 0 : i32
    %c0_i32_1 = arith.constant 0 : i32
    return %c0_i32, %c0_i32_0 : i32, i32
  }
  func.func @transform_11(%arg0: i32) -> (i32, i32) {
    %c0_i32 = arith.constant 0 : i32
    %c0_i32_0 = arith.constant 0 : i32
    %c0_i32_1 = arith.constant 0 : i32
    return %c0_i32, %c0_i32_0 : i32, i32
  }
  func.func @transform_12(%arg0: i32) -> (i32, i32) {
    %c0_i32 = arith.constant 0 : i32
    %c0_i32_0 = arith.constant 0 : i32
    %c0_i32_1 = arith.constant 0 : i32
    return %c0_i32, %c0_i32_0 : i32, i32
  }
  func.func @transform_13(%arg0: i32) -> (i32, i32) {
    %c0_i32 = arith.constant 0 : i32
    %c0_i32_0 = arith.constant 0 : i32
    return %arg0, %c0_i32 : i32, i32
  }
  func.func @transform_14(%arg0: i32) -> (i32, i32) {
    %c0_i32 = arith.constant 0 : i32
    %c0_i32_0 = arith.constant 0 : i32
    return %arg0, %c0_i32 : i32, i32
  }
}

</mosaic_0001>

<llo_original>
// kernel: pose_autoencoder_forward.1
$region0: #{pose_autoencoder_forward.1}
  #allocation0 [shape = 'u32[]', space=smem, size = 0x4, offset = 0x4, fixed_abs, tag = 'smem constant byte address 0x4 - core index']
  #allocation1 [shape = 'u32[72,128]{1,0:T(1,128)}', space=vmem, size = 0x9000, scoped, tag = 'internal scratch']
  %s0 = inlined_call_operand.vmem [shape: bf16[8,128], index: 0, kind: input, shape index: {}]
  %s1 = inlined_call_operand.vmem [shape: bf16[128,128], index: 1, kind: input, shape index: {}]
  %s2 = inlined_call_operand.vmem [shape: f32[1,128], index: 2, kind: input, shape index: {}]
  %s3 = inlined_call_operand.vmem [shape: bf16[128,256], index: 3, kind: input, shape index: {}]
  %s4 = inlined_call_operand.vmem [shape: f32[1,256], index: 4, kind: input, shape index: {}]
  %s5 = inlined_call_operand.vmem [shape: bf16[256,128], index: 5, kind: input, shape index: {}]
  %s6 = inlined_call_operand.vmem [shape: f32[1,128], index: 6, kind: input, shape index: {}]
  %s7 = inlined_call_operand.vmem [shape: bf16[128,256], index: 7, kind: input, shape index: {}]
  %s8 = inlined_call_operand.vmem [shape: f32[1,256], index: 8, kind: input, shape index: {}]
  %s9 = inlined_call_operand.vmem [shape: bf16[256,128], index: 9, kind: input, shape index: {}]
  %s10 = inlined_call_operand.vmem [shape: f32[1,128], index: 10, kind: input, shape index: {}]
  %s11 = inlined_call_operand.vmem [shape: bf16[128,128], index: 11, kind: input, shape index: {}]
  %s12 = inlined_call_operand.vmem [shape: f32[1,128], index: 12, kind: input, shape index: {}]
  %s13 = inlined_call_operand.hbm [shape: f32[8,128], index: 13, kind: output, shape index: {0}]
  %s14 = inlined_call_operand.hbm [shape: f32[8,128], index: 14, kind: output, shape index: {1}]
  %15 = xla_tuple %s13, %s14
  %s16 = sld [smem:[#allocation0]]
  $region70: #{pose_autoencoder_forward.1} parent=0
    _
  %s18 = ssub.s32 1, %s16
  %s19 = scalar_select 0, %s18, %s16
  $region1: #{pose_autoencoder_forward.1} parent=0
    #allocation2 [shape = 'u8[4096]{0}', space=vmem, size = 0x1000, scoped, tag = 'output window, operand 0, single buffered']
    #allocation3 [shape = 's32[1]{0}', space=sflag, size = 0x4, scoped, tag = 'scoped memory for pose_autoencoder_forward.1']
    #allocation4 [shape = 'u8[4096]{0}', space=vmem, size = 0x1000, scoped, tag = 'output window, operand 1, single buffered']
    #allocation5 [shape = 's32[1]{0}', space=sflag, size = 0x4, scoped, tag = 'scoped memory for pose_autoencoder_forward.1']
    %20 = vsyncpa [#allocation3], 0
    %21 = vsyncpa [#allocation5], 0
    // Predicated region
    $region2: #{pose_autoencoder_forward.1} parent=1 // pred_check
      _
    $region3: #{pose_autoencoder_forward.1} parent=1 // pred_check_branch
      %23 = sbr.rel (0) target = $region5
    $region4: #{pose_autoencoder_forward.1} parent=1 // pred_region
      _
    $region5: #{pose_autoencoder_forward.1} parent=1 // pred_fallthru
      _
    // Predicated region
    $region6: #{pose_autoencoder_forward.1} parent=1 // pred_check
      _
    $region7: #{pose_autoencoder_forward.1} parent=1 // pred_check_branch
      %25 = sbr.rel (0) target = $region9
    $region8: #{pose_autoencoder_forward.1} parent=1 // pred_region
      _
    $region9: #{pose_autoencoder_forward.1} parent=1 // pred_fallthru
      _
    // Predicated region
    $region10: #{pose_autoencoder_forward.1} parent=1 // pred_check
      _
    $region11: #{pose_autoencoder_forward.1} parent=1 // pred_check_branch
      %27 = sbr.rel (0) target = $region13
    $region12: #{pose_autoencoder_forward.1} parent=1 // pred_region
      _
    $region13: #{pose_autoencoder_forward.1} parent=1 // pred_fallthru
      _
    // Predicated region
    $region14: #{pose_autoencoder_forward.1} parent=1 // pred_check
      _
    $region15: #{pose_autoencoder_forward.1} parent=1 // pred_check_branch
      %29 = sbr.rel (0) target = $region17
    $region16: #{pose_autoencoder_forward.1} parent=1 // pred_region
      _
    $region17: #{pose_autoencoder_forward.1} parent=1 // pred_fallthru
      _
    // Predicated region
    $region18: #{pose_autoencoder_forward.1} parent=1 // pred_check
      _
    $region19: #{pose_autoencoder_forward.1} parent=1 // pred_check_branch
      %31 = sbr.rel (0) target = $region21
    $region20: #{pose_autoencoder_forward.1} parent=1 // pred_region
      _
    $region21: #{pose_autoencoder_forward.1} parent=1 // pred_fallthru
      _
    // Predicated region
    $region22: #{pose_autoencoder_forward.1} parent=1 // pred_check
      _
    $region23: #{pose_autoencoder_forward.1} parent=1 // pred_check_branch
      %33 = sbr.rel (0) target = $region25
    $region24: #{pose_autoencoder_forward.1} parent=1 // pred_region
      _
    $region25: #{pose_autoencoder_forward.1} parent=1 // pred_fallthru
      _
    // Predicated region
    $region26: #{pose_autoencoder_forward.1} parent=1 // pred_check
      _
    $region27: #{pose_autoencoder_forward.1} parent=1 // pred_check_branch
      %35 = sbr.rel (0) target = $region29
    $region28: #{pose_autoencoder_forward.1} parent=1 // pred_region
      _
    $region29: #{pose_autoencoder_forward.1} parent=1 // pred_fallthru
      _
    // Predicated region
    $region30: #{pose_autoencoder_forward.1} parent=1 // pred_check
      _
    $region31: #{pose_autoencoder_forward.1} parent=1 // pred_check_branch
      %37 = sbr.rel (0) target = $region33
    $region32: #{pose_autoencoder_forward.1} parent=1 // pred_region
      _
    $region33: #{pose_autoencoder_forward.1} parent=1 // pred_fallthru
      _
    // Predicated region
    $region34: #{pose_autoencoder_forward.1} parent=1 // pred_check
      _
    $region35: #{pose_autoencoder_forward.1} parent=1 // pred_check_branch
      %39 = sbr.rel (0) target = $region37
    $region36: #{pose_autoencoder_forward.1} parent=1 // pred_region
      _
    $region37: #{pose_autoencoder_forward.1} parent=1 // pred_fallthru
      _
    // Predicated region
    $region38: #{pose_autoencoder_forward.1} parent=1 // pred_check
      _
    $region39: #{pose_autoencoder_forward.1} parent=1 // pred_check_branch
      %41 = sbr.rel (0) target = $region41
    $region40: #{pose_autoencoder_forward.1} parent=1 // pred_region
      _
    $region41: #{pose_autoencoder_forward.1} parent=1 // pred_fallthru
      _
    // Predicated region
    $region42: #{pose_autoencoder_forward.1} parent=1 // pred_check
      _
    $region43: #{pose_autoencoder_forward.1} parent=1 // pred_check_branch
      %43 = sbr.rel (0) target = $region45
    $region44: #{pose_autoencoder_forward.1} parent=1 // pred_region
      _
    $region45: #{pose_autoencoder_forward.1} parent=1 // pred_fallthru
      _
    // Predicated region
    $region46: #{pose_autoencoder_forward.1} parent=1 // pred_check
      _
    $region47: #{pose_autoencoder_forward.1} parent=1 // pred_check_branch
      %45 = sbr.rel (0) target = $region49
    $region48: #{pose_autoencoder_forward.1} parent=1 // pred_region
      _
    $region49: #{pose_autoencoder_forward.1} parent=1 // pred_fallthru
      _
    // Predicated region
    $region50: #{pose_autoencoder_forward.1} parent=1 // pred_check
      _
    $region51: #{pose_autoencoder_forward.1} parent=1 // pred_check_branch
      %47 = sbr.rel (0) target = $region53
    $region52: #{pose_autoencoder_forward.1} parent=1 // pred_region
      _
    $region53: #{pose_autoencoder_forward.1} parent=1 // pred_fallthru
      _
    %v48 = vld [vmem:[%s0] sm:$0xf]
    %v49 = vld [vmem:[%s1] sm:$0xf]
    %v50 = vld [vmem:[%s1 + $0x4] sm:$0xf]
    %v51 = vld [vmem:[%s1 + $0x8] sm:$0xf]
    %v52 = vld [vmem:[%s1 + $0xc] sm:$0xf]
    %v53 = vld [vmem:[%s1 + $0x10] sm:$0xf]
    %v54 = vld [vmem:[%s1 + $0x14] sm:$0xf]
    %v55 = vld [vmem:[%s1 + $0x18] sm:$0xf]
    %v56 = vld [vmem:[%s1 + $0x1c] sm:$0xf]
    %v57 = vld [vmem:[%s1 + $0x20] sm:$0xf]
    %v58 = vld [vmem:[%s1 + $0x24] sm:$0xf]
    %v59 = vld [vmem:[%s1 + $0x28] sm:$0xf]
    %v60 = vld [vmem:[%s1 + $0x2c] sm:$0xf]
    %v61 = vld [vmem:[%s1 + $0x30] sm:$0xf]
    %v62 = vld [vmem:[%s1 + $0x34] sm:$0xf]
    %v63 = vld [vmem:[%s1 + $0x38] sm:$0xf]
    %v64 = vld [vmem:[%s1 + $0x3c] sm:$0xf]
    %v65 = vld [vmem:[%s2] sm:$0x1]
    %v67 = vperm.slane %v65, 0
    %v85 = vunpack.c.l.b16 %v49
    %v86 = vunpack.c.l.b16 %v50
    %v87 = vunpack.c.l.b16 %v51
    %v88 = vunpack.c.l.b16 %v52
    %v89 = vunpack.c.l.b16 %v53
    %v90 = vunpack.c.l.b16 %v54
    %v91 = vunpack.c.l.b16 %v55
    %v92 = vunpack.c.l.b16 %v56
    %v93 = vunpack.c.l.b16 %v57
    %v94 = vunpack.c.l.b16 %v58
    %v95 = vunpack.c.l.b16 %v59
    %v96 = vunpack.c.l.b16 %v60
    %v97 = vunpack.c.l.b16 %v61
    %v98 = vunpack.c.l.b16 %v62
    %v99 = vunpack.c.l.b16 %v63
    %v100 = vunpack.c.l.b16 %v64
    %v101 = vpack.c.b16 %v86, %v85
    %v102 = vpack.c.b16 %v88, %v87
    %v103 = vpack.c.b16 %v90, %v89
    %v104 = vpack.c.b16 %v92, %v91
    %v105 = vpack.c.b16 %v94, %v93
    %v106 = vpack.c.b16 %v96, %v95
    %v107 = vpack.c.b16 %v98, %v97
    %v108 = vpack.c.b16 %v100, %v99
    %117 = vmatpush.bf16.msra.mxu0 %v108
    %118 = vmatpush.bf16.msra.mxu0 %v107
    %119 = vmatpush.bf16.msra.mxu0 %v106
    %120 = vmatpush.bf16.msra.mxu0 %v105
    %121 = vmatpush.bf16.msra.mxu0 %v104
    %122 = vmatpush.bf16.msra.mxu0 %v103
    %123 = vmatpush.bf16.msra.mxu0 %v102
    %124 = vmatpush.bf16.msra.mxu0 %v101
    %125 = vmatmul.bf16.gmra.mxu0 %v48
    %v126 = vpop.f32.mrf.mxu0
    %v127 = vadd.f32 %v67, %v126
    %v128 = vpop.f32.mrf.mxu0
    %129 = vdwg.mxu0
    %v130 = vmax.f32 %v127, 0.0
    %v131 = vpack.c.bf16 %v130, %v130
    %v132 = vld [vmem:[%s3] sm:$0xff]
    %v133 = vld [vmem:[%s3 + $0x8] sm:$0xff]
    %v134 = vld [vmem:[%s3 + $0x10] sm:$0xff]
    %v135 = vld [vmem:[%s3 + $0x18] sm:$0xff]
    %v136 = vld [vmem:[%s3 + $0x20] sm:$0xff]
    %v137 = vld [vmem:[%s3 + $0x28] sm:$0xff]
    %v138 = vld [vmem:[%s3 + $0x30] sm:$0xff]
    %v139 = vld [vmem:[%s3 + $0x38] sm:$0xff]
    %v140 = vld [vmem:[%s3 + $0x40] sm:$0xff]
    %v141 = vld [vmem:[%s3 + $0x48] sm:$0xff]
    %v142 = vld [vmem:[%s3 + $0x50] sm:$0xff]
    %v143 = vld [vmem:[%s3 + $0x58] sm:$0xff]
    %v144 = vld [vmem:[%s3 + $0x60] sm:$0xff]
    %v145 = vld [vmem:[%s3 + $0x68] sm:$0xff]
    %v146 = vld [vmem:[%s3 + $0x70] sm:$0xff]
    %v147 = vld [vmem:[%s3 + $0x78] sm:$0xff]
    %v148 = vld [vmem:[%s4] sm:$0x3]
    %v150 = vperm.slane %v148, 0
    %v151 = vperm.slane %v148, 1
    %v170 = vunpack.c.l.b16 %v132
    %v171 = vunpack.c.h.b16 %v132
    %v172 = vunpack.c.l.b16 %v133
    %v173 = vunpack.c.h.b16 %v133
    %v174 = vunpack.c.l.b16 %v134
    %v175 = vunpack.c.h.b16 %v134
    %v176 = vunpack.c.l.b16 %v135
    %v177 = vunpack.c.h.b16 %v135
    %v178 = vunpack.c.l.b16 %v136
    %v179 = vunpack.c.h.b16 %v136
    %v180 = vunpack.c.l.b16 %v137
    %v181 = vunpack.c.h.b16 %v137
    %v182 = vunpack.c.l.b16 %v138
    %v183 = vunpack.c.h.b16 %v138
    %v184 = vunpack.c.l.b16 %v139
    %v185 = vunpack.c.h.b16 %v139
    %v186 = vunpack.c.l.b16 %v140
    %v187 = vunpack.c.h.b16 %v140
    %v188 = vunpack.c.l.b16 %v141
    %v189 = vunpack.c.h.b16 %v141
    %v190 = vunpack.c.l.b16 %v142
    %v191 = vunpack.c.h.b16 %v142
    %v192 = vunpack.c.l.b16 %v143
    %v193 = vunpack.c.h.b16 %v143
    %v194 = vunpack.c.l.b16 %v144
    %v195 = vunpack.c.h.b16 %v144
    %v196 = vunpack.c.l.b16 %v145
    %v197 = vunpack.c.h.b16 %v145
    %v198 = vunpack.c.l.b16 %v146
    %v199 = vunpack.c.h.b16 %v146
    %v200 = vunpack.c.l.b16 %v147
    %v201 = vunpack.c.h.b16 %v147
    %v202 = vpack.c.b16 %v172, %v170
    %v203 = vpack.c.b16 %v173, %v171
    %v204 = vpack.c.b16 %v176, %v174
    %v205 = vpack.c.b16 %v177, %v175
    %v206 = vpack.c.b16 %v180, %v178
    %v207 = vpack.c.b16 %v181, %v179
    %v208 = vpack.c.b16 %v184, %v182
    %v209 = vpack.c.b16 %v185, %v183
    %v210 = vpack.c.b16 %v188, %v186
    %v211 = vpack.c.b16 %v189, %v187
    %v212 = vpack.c.b16 %v192, %v190
    %v213 = vpack.c.b16 %v193, %v191
    %v214 = vpack.c.b16 %v196, %v194
    %v215 = vpack.c.b16 %v197, %v195
    %v216 = vpack.c.b16 %v200, %v198
    %v217 = vpack.c.b16 %v201, %v199
    %234 = vmatpush.bf16.msra.mxu0 %v216
    %235 = vmatpush.bf16.msra.mxu0 %v214
    %236 = vmatpush.bf16.msra.mxu0 %v212
    %237 = vmatpush.bf16.msra.mxu0 %v210
    %238 = vmatpush.bf16.msra.mxu0 %v208
    %239 = vmatpush.bf16.msra.mxu0 %v206
    %240 = vmatpush.bf16.msra.mxu0 %v204
    %241 = vmatpush.bf16.msra.mxu0 %v202
    %242 = vmatmul.bf16.gmra.mxu0 %v131
    %v243 = vpop.f32.mrf.mxu0
    %v244 = vadd.f32 %v150, %v243
    %v245 = vpop.f32.mrf.mxu0
    %246 = vdwg.mxu0
    %247 = vmatpush.bf16.msra.mxu0 %v217
    %248 = vmatpush.bf16.msra.mxu0 %v215
    %249 = vmatpush.bf16.msra.mxu0 %v213
    %250 = vmatpush.bf16.msra.mxu0 %v211
    %251 = vmatpush.bf16.msra.mxu0 %v209
    %252 = vmatpush.bf16.msra.mxu0 %v207
    %253 = vmatpush.bf16.msra.mxu0 %v205
    %254 = vmatpush.bf16.msra.mxu0 %v203
    %255 = vmatmul.bf16.gmra.mxu0 %v131
    %v256 = vpop.f32.mrf.mxu0
    %v257 = vadd.f32 %v151, %v256
    %v258 = vpop.f32.mrf.mxu0
    %259 = vdwg.mxu0
    %v260 = vmax.f32 %v244, 0.0
    %v261 = vmax.f32 %v257, 0.0
    %v262 = vpack.c.bf16 %v260, %v260
    %v263 = vpack.c.bf16 %v261, %v261
    %v264 = vld [vmem:[%s5] sm:$0xf]
    %v265 = vld [vmem:[%s5 + $0x4] sm:$0xf]
    %v266 = vld [vmem:[%s5 + $0x8] sm:$0xf]
    %v267 = vld [vmem:[%s5 + $0xc] sm:$0xf]
    %v268 = vld [vmem:[%s5 + $0x10] sm:$0xf]
    %v269 = vld [vmem:[%s5 + $0x14] sm:$0xf]
    %v270 = vld [vmem:[%s5 + $0x18] sm:$0xf]
    %v271 = vld [vmem:[%s5 + $0x1c] sm:$0xf]
    %v272 = vld [vmem:[%s5 + $0x20] sm:$0xf]
    %v273 = vld [vmem:[%s5 + $0x24] sm:$0xf]
    %v274 = vld [vmem:[%s5 + $0x28] sm:$0xf]
    %v275 = vld [vmem:[%s5 + $0x2c] sm:$0xf]
    %v276 = vld [vmem:[%s5 + $0x30] sm:$0xf]
    %v277 = vld [vmem:[%s5 + $0x34] sm:$0xf]
    %v278 = vld [vmem:[%s5 + $0x38] sm:$0xf]
    %v279 = vld [vmem:[%s5 + $0x3c] sm:$0xf]
    %v280 = vld [vmem:[%s5 + $0x40] sm:$0xf]
    %v281 = vld [vmem:[%s5 + $0x44] sm:$0xf]
    %v282 = vld [vmem:[%s5 + $0x48] sm:$0xf]
    %v283 = vld [vmem:[%s5 + $0x4c] sm:$0xf]
    %v284 = vld [vmem:[%s5 + $0x50] sm:$0xf]
    %v285 = vld [vmem:[%s5 + $0x54] sm:$0xf]
    %v286 = vld [vmem:[%s5 + $0x58] sm:$0xf]
    %v287 = vld [vmem:[%s5 + $0x5c] sm:$0xf]
    %v288 = vld [vmem:[%s5 + $0x60] sm:$0xf]
    %v289 = vld [vmem:[%s5 + $0x64] sm:$0xf]
    %v290 = vld [vmem:[%s5 + $0x68] sm:$0xf]
    %v291 = vld [vmem:[%s5 + $0x6c] sm:$0xf]
    %v292 = vld [vmem:[%s5 + $0x70] sm:$0xf]
    %v293 = vld [vmem:[%s5 + $0x74] sm:$0xf]
    %v294 = vld [vmem:[%s5 + $0x78] sm:$0xf]
    %v295 = vld [vmem:[%s5 + $0x7c] sm:$0xf]
    %v296 = vld [vmem:[%s6] sm:$0x1]
    %v298 = vperm.slane %v296, 0
    %v332 = vunpack.c.l.b16 %v264
    %v333 = vunpack.c.l.b16 %v265
    %v334 = vunpack.c.l.b16 %v266
    %v335 = vunpack.c.l.b16 %v267
    %v336 = vunpack.c.l.b16 %v268
    %v337 = vunpack.c.l.b16 %v269
    %v338 = vunpack.c.l.b16 %v270
    %v339 = vunpack.c.l.b16 %v271
    %v340 = vunpack.c.l.b16 %v272
    %v341 = vunpack.c.l.b16 %v273
    %v342 = vunpack.c.l.b16 %v274
    %v343 = vunpack.c.l.b16 %v275
    %v344 = vunpack.c.l.b16 %v276
    %v345 = vunpack.c.l.b16 %v277
    %v346 = vunpack.c.l.b16 %v278
    %v347 = vunpack.c.l.b16 %v279
    %v348 = vunpack.c.l.b16 %v280
    %v349 = vunpack.c.l.b16 %v281
    %v350 = vunpack.c.l.b16 %v282
    %v351 = vunpack.c.l.b16 %v283
    %v352 = vunpack.c.l.b16 %v284
    %v353 = vunpack.c.l.b16 %v285
    %v354 = vunpack.c.l.b16 %v286
    %v355 = vunpack.c.l.b16 %v287
    %v356 = vunpack.c.l.b16 %v288
    %v357 = vunpack.c.l.b16 %v289
    %v358 = vunpack.c.l.b16 %v290
    %v359 = vunpack.c.l.b16 %v291
    %v360 = vunpack.c.l.b16 %v292
    %v361 = vunpack.c.l.b16 %v293
    %v362 = vunpack.c.l.b16 %v294
    %v363 = vunpack.c.l.b16 %v295
    %v364 = vpack.c.b16 %v333, %v332
    %v365 = vpack.c.b16 %v335, %v334
    %v366 = vpack.c.b16 %v337, %v336
    %v367 = vpack.c.b16 %v339, %v338
    %v368 = vpack.c.b16 %v341, %v340
    %v369 = vpack.c.b16 %v343, %v342
    %v370 = vpack.c.b16 %v345, %v344
    %v371 = vpack.c.b16 %v347, %v346
    %v372 = vpack.c.b16 %v349, %v348
    %v373 = vpack.c.b16 %v351, %v350
    %v374 = vpack.c.b16 %v353, %v352
    %v375 = vpack.c.b16 %v355, %v354
    %v376 = vpack.c.b16 %v357, %v356
    %v377 = vpack.c.b16 %v359, %v358
    %v378 = vpack.c.b16 %v361, %v360
    %v379 = vpack.c.b16 %v363, %v362
    %396 = vmatpush.bf16.msra.mxu0 %v371
    %397 = vmatpush.bf16.msra.mxu0 %v370
    %398 = vmatpush.bf16.msra.mxu0 %v369
    %399 = vmatpush.bf16.msra.mxu0 %v368
    %400 = vmatpush.bf16.msra.mxu0 %v367
    %401 = vmatpush.bf16.msra.mxu0 %v366
    %402 = vmatpush.bf16.msra.mxu0 %v365
    %403 = vmatpush.bf16.msra.mxu0 %v364
    %404 = vmatmul.bf16.gmra.mxu0 %v262
    %v405 = vpop.f32.mrf.mxu0
    %v406 = vadd.f32 %v298, %v405
    %v407 = vpop.f32.mrf.mxu0
    %408 = vdwg.mxu0
    %409 = vmatpush.bf16.msra.mxu0 %v379
    %410 = vmatpush.bf16.msra.mxu0 %v378
    %411 = vmatpush.bf16.msra.mxu0 %v377
    %412 = vmatpush.bf16.msra.mxu0 %v376
    %413 = vmatpush.bf16.msra.mxu0 %v375
    %414 = vmatpush.bf16.msra.mxu0 %v374
    %415 = vmatpush.bf16.msra.mxu0 %v373
    %416 = vmatpush.bf16.msra.mxu0 %v372
    %417 = vmatmul.bf16.gmra.mxu0 %v263
    %v418 = vpop.f32.mrf.mxu0
    %v419 = vadd.f32 %v406, %v418
    %v420 = vpop.f32.mrf.mxu0
    %421 = vdwg.mxu0
    %v422 = vpack.c.bf16 %v419, %v419
    %v423 = vld [vmem:[%s7] sm:$0xff]
    %v424 = vld [vmem:[%s7 + $0x8] sm:$0xff]
    %v425 = vld [vmem:[%s7 + $0x10] sm:$0xff]
    %v426 = vld [vmem:[%s7 + $0x18] sm:$0xff]
    %v427 = vld [vmem:[%s7 + $0x20] sm:$0xff]
    %v428 = vld [vmem:[%s7 + $0x28] sm:$0xff]
    %v429 = vld [vmem:[%s7 + $0x30] sm:$0xff]
    %v430 = vld [vmem:[%s7 + $0x38] sm:$0xff]
    %v431 = vld [vmem:[%s7 + $0x40] sm:$0xff]
    %v432 = vld [vmem:[%s7 + $0x48] sm:$0xff]
    %v433 = vld [vmem:[%s7 + $0x50] sm:$0xff]
    %v434 = vld [vmem:[%s7 + $0x58] sm:$0xff]
    %v435 = vld [vmem:[%s7 + $0x60] sm:$0xff]
    %v436 = vld [vmem:[%s7 + $0x68] sm:$0xff]
    %v437 = vld [vmem:[%s7 + $0x70] sm:$0xff]
    %v438 = vld [vmem:[%s7 + $0x78] sm:$0xff]
    %v439 = vld [vmem:[%s8] sm:$0x3]
    %v441 = vperm.slane %v439, 0
    %v442 = vperm.slane %v439, 1
    %v461 = vunpack.c.l.b16 %v423
    %v462 = vunpack.c.h.b16 %v423
    %v463 = vunpack.c.l.b16 %v424
    %v464 = vunpack.c.h.b16 %v424
    %v465 = vunpack.c.l.b16 %v425
    %v466 = vunpack.c.h.b16 %v425
    %v467 = vunpack.c.l.b16 %v426
    %v468 = vunpack.c.h.b16 %v426
    %v469 = vunpack.c.l.b16 %v427
    %v470 = vunpack.c.h.b16 %v427
    %v471 = vunpack.c.l.b16 %v428
    %v472 = vunpack.c.h.b16 %v428
    %v473 = vunpack.c.l.b16 %v429
    %v474 = vunpack.c.h.b16 %v429
    %v475 = vunpack.c.l.b16 %v430
    %v476 = vunpack.c.h.b16 %v430
    %v477 = vunpack.c.l.b16 %v431
    %v478 = vunpack.c.h.b16 %v431
    %v479 = vunpack.c.l.b16 %v432
    %v480 = vunpack.c.h.b16 %v432
    %v481 = vunpack.c.l.b16 %v433
    %v482 = vunpack.c.h.b16 %v433
    %v483 = vunpack.c.l.b16 %v434
    %v484 = vunpack.c.h.b16 %v434
    %v485 = vunpack.c.l.b16 %v435
    %v486 = vunpack.c.h.b16 %v435
    %v487 = vunpack.c.l.b16 %v436
    %v488 = vunpack.c.h.b16 %v436
    %v489 = vunpack.c.l.b16 %v437
    %v490 = vunpack.c.h.b16 %v437
    %v491 = vunpack.c.l.b16 %v438
    %v492 = vunpack.c.h.b16 %v438
    %v493 = vpack.c.b16 %v463, %v461
    %v494 = vpack.c.b16 %v464, %v462
    %v495 = vpack.c.b16 %v467, %v465
    %v496 = vpack.c.b16 %v468, %v466
    %v497 = vpack.c.b16 %v471, %v469
    %v498 = vpack.c.b16 %v472, %v470
    %v499 = vpack.c.b16 %v475, %v473
    %v500 = vpack.c.b16 %v476, %v474
    %v501 = vpack.c.b16 %v479, %v477
    %v502 = vpack.c.b16 %v480, %v478
    %v503 = vpack.c.b16 %v483, %v481
    %v504 = vpack.c.b16 %v484, %v482
    %v505 = vpack.c.b16 %v487, %v485
    %v506 = vpack.c.b16 %v488, %v486
    %v507 = vpack.c.b16 %v491, %v489
    %v508 = vpack.c.b16 %v492, %v490
    %525 = vmatpush.bf16.msra.mxu0 %v507
    %526 = vmatpush.bf16.msra.mxu0 %v505
    %527 = vmatpush.bf16.msra.mxu0 %v503
    %528 = vmatpush.bf16.msra.mxu0 %v501
    %529 = vmatpush.bf16.msra.mxu0 %v499
    %530 = vmatpush.bf16.msra.mxu0 %v497
    %531 = vmatpush.bf16.msra.mxu0 %v495
    %532 = vmatpush.bf16.msra.mxu0 %v493
    %533 = vmatmul.bf16.gmra.mxu0 %v422
    %v534 = vpop.f32.mrf.mxu0
    %v535 = vadd.f32 %v441, %v534
    %v536 = vpop.f32.mrf.mxu0
    %537 = vdwg.mxu0
    %538 = vmatpush.bf16.msra.mxu0 %v508
    %539 = vmatpush.bf16.msra.mxu0 %v506
    %540 = vmatpush.bf16.msra.mxu0 %v504
    %541 = vmatpush.bf16.msra.mxu0 %v502
    %542 = vmatpush.bf16.msra.mxu0 %v500
    %543 = vmatpush.bf16.msra.mxu0 %v498
    %544 = vmatpush.bf16.msra.mxu0 %v496
    %545 = vmatpush.bf16.msra.mxu0 %v494
    %546 = vmatmul.bf16.gmra.mxu0 %v422
    %v547 = vpop.f32.mrf.mxu0
    %v548 = vadd.f32 %v442, %v547
    %v549 = vpop.f32.mrf.mxu0
    %550 = vdwg.mxu0
    %v551 = vmax.f32 %v535, 0.0
    %v552 = vmax.f32 %v548, 0.0
    %v553 = vpack.c.bf16 %v551, %v551
    %v554 = vpack.c.bf16 %v552, %v552
    %v555 = vld [vmem:[%s9] sm:$0xf]
    %v556 = vld [vmem:[%s9 + $0x4] sm:$0xf]
    %v557 = vld [vmem:[%s9 + $0x8] sm:$0xf]
    %v558 = vld [vmem:[%s9 + $0xc] sm:$0xf]
    %v559 = vld [vmem:[%s9 + $0x10] sm:$0xf]
    %v560 = vld [vmem:[%s9 + $0x14] sm:$0xf]
    %v561 = vld [vmem:[%s9 + $0x18] sm:$0xf]
    %v562 = vld [vmem:[%s9 + $0x1c] sm:$0xf]
    %v563 = vld [vmem:[%s9 + $0x20] sm:$0xf]
    %v564 = vld [vmem:[%s9 + $0x24] sm:$0xf]
    %v565 = vld [vmem:[%s9 + $0x28] sm:$0xf]
    %v566 = vld [vmem:[%s9 + $0x2c] sm:$0xf]
    %v567 = vld [vmem:[%s9 + $0x30] sm:$0xf]
    %v568 = vld [vmem:[%s9 + $0x34] sm:$0xf]
    %v569 = vld [vmem:[%s9 + $0x38] sm:$0xf]
    %v570 = vld [vmem:[%s9 + $0x3c] sm:$0xf]
    %v571 = vld [vmem:[%s9 + $0x40] sm:$0xf]
    %v572 = vld [vmem:[%s9 + $0x44] sm:$0xf]
    %v573 = vld [vmem:[%s9 + $0x48] sm:$0xf]
    %v574 = vld [vmem:[%s9 + $0x4c] sm:$0xf]
    %v575 = vld [vmem:[%s9 + $0x50] sm:$0xf]
    %v576 = vld [vmem:[%s9 + $0x54] sm:$0xf]
    %v577 = vld [vmem:[%s9 + $0x58] sm:$0xf]
    %v578 = vld [vmem:[%s9 + $0x5c] sm:$0xf]
    %v579 = vld [vmem:[%s9 + $0x60] sm:$0xf]
    %v580 = vld [vmem:[%s9 + $0x64] sm:$0xf]
    %v581 = vld [vmem:[%s9 + $0x68] sm:$0xf]
    %v582 = vld [vmem:[%s9 + $0x6c] sm:$0xf]
    %v583 = vld [vmem:[%s9 + $0x70] sm:$0xf]
    %v584 = vld [vmem:[%s9 + $0x74] sm:$0xf]
    %v585 = vld [vmem:[%s9 + $0x78] sm:$0xf]
    %v586 = vld [vmem:[%s9 + $0x7c] sm:$0xf]
    %v587 = vld [vmem:[%s10] sm:$0x1]
    %v589 = vperm.slane %v587, 0
    %v623 = vunpack.c.l.b16 %v555
    %v624 = vunpack.c.l.b16 %v556
    %v625 = vunpack.c.l.b16 %v557
    %v626 = vunpack.c.l.b16 %v558
    %v627 = vunpack.c.l.b16 %v559
    %v628 = vunpack.c.l.b16 %v560
    %v629 = vunpack.c.l.b16 %v561
    %v630 = vunpack.c.l.b16 %v562
    %v631 = vunpack.c.l.b16 %v563
    %v632 = vunpack.c.l.b16 %v564
    %v633 = vunpack.c.l.b16 %v565
    %v634 = vunpack.c.l.b16 %v566
    %v635 = vunpack.c.l.b16 %v567
    %v636 = vunpack.c.l.b16 %v568
    %v637 = vunpack.c.l.b16 %v569
    %v638 = vunpack.c.l.b16 %v570
    %v639 = vunpack.c.l.b16 %v571
    %v640 = vunpack.c.l.b16 %v572
    %v641 = vunpack.c.l.b16 %v573
    %v642 = vunpack.c.l.b16 %v574
    %v643 = vunpack.c.l.b16 %v575
    %v644 = vunpack.c.l.b16 %v576
    %v645 = vunpack.c.l.b16 %v577
    %v646 = vunpack.c.l.b16 %v578
    %v647 = vunpack.c.l.b16 %v579
    %v648 = vunpack.c.l.b16 %v580
    %v649 = vunpack.c.l.b16 %v581
    %v650 = vunpack.c.l.b16 %v582
    %v651 = vunpack.c.l.b16 %v583
    %v652 = vunpack.c.l.b16 %v584
    %v653 = vunpack.c.l.b16 %v585
    %v654 = vunpack.c.l.b16 %v586
    %v655 = vpack.c.b16 %v624, %v623
    %v656 = vpack.c.b16 %v626, %v625
    %v657 = vpack.c.b16 %v628, %v627
    %v658 = vpack.c.b16 %v630, %v629
    %v659 = vpack.c.b16 %v632, %v631
    %v660 = vpack.c.b16 %v634, %v633
    %v661 = vpack.c.b16 %v636, %v635
    %v662 = vpack.c.b16 %v638, %v637
    %v663 = vpack.c.b16 %v640, %v639
    %v664 = vpack.c.b16 %v642, %v641
    %v665 = vpack.c.b16 %v644, %v643
    %v666 = vpack.c.b16 %v646, %v645
    %v667 = vpack.c.b16 %v648, %v647
    %v668 = vpack.c.b16 %v650, %v649
    %v669 = vpack.c.b16 %v652, %v651
    %v670 = vpack.c.b16 %v654, %v653
    %687 = vmatpush.bf16.msra.mxu0 %v662
    %688 = vmatpush.bf16.msra.mxu0 %v661
    %689 = vmatpush.bf16.msra.mxu0 %v660
    %690 = vmatpush.bf16.msra.mxu0 %v659
    %691 = vmatpush.bf16.msra.mxu0 %v658
    %692 = vmatpush.bf16.msra.mxu0 %v657
    %693 = vmatpush.bf16.msra.mxu0 %v656
    %694 = vmatpush.bf16.msra.mxu0 %v655
    %695 = vmatmul.bf16.gmra.mxu0 %v553
    %v696 = vpop.f32.mrf.mxu0
    %v697 = vadd.f32 %v589, %v696
    %v698 = vpop.f32.mrf.mxu0
    %699 = vdwg.mxu0
    %700 = vmatpush.bf16.msra.mxu0 %v670
    %701 = vmatpush.bf16.msra.mxu0 %v669
    %702 = vmatpush.bf16.msra.mxu0 %v668
    %703 = vmatpush.bf16.msra.mxu0 %v667
    %704 = vmatpush.bf16.msra.mxu0 %v666
    %705 = vmatpush.bf16.msra.mxu0 %v665
    %706 = vmatpush.bf16.msra.mxu0 %v664
    %707 = vmatpush.bf16.msra.mxu0 %v663
    %708 = vmatmul.bf16.gmra.mxu0 %v554
    %v709 = vpop.f32.mrf.mxu0
    %v710 = vadd.f32 %v697, %v709
    %v711 = vpop.f32.mrf.mxu0
    %712 = vdwg.mxu0
    %v713 = vmax.f32 %v710, 0.0
    %v714 = vpack.c.bf16 %v713, %v713
    %v715 = vld [vmem:[%s11] sm:$0xf]
    %v716 = vld [vmem:[%s11 + $0x4] sm:$0xf]
    %v717 = vld [vmem:[%s11 + $0x8] sm:$0xf]
    %v718 = vld [vmem:[%s11 + $0xc] sm:$0xf]
    %v719 = vld [vmem:[%s11 + $0x10] sm:$0xf]
    %v720 = vld [vmem:[%s11 + $0x14] sm:$0xf]
    %v721 = vld [vmem:[%s11 + $0x18] sm:$0xf]
    %v722 = vld [vmem:[%s11 + $0x1c] sm:$0xf]
    %v723 = vld [vmem:[%s11 + $0x20] sm:$0xf]
    %v724 = vld [vmem:[%s11 + $0x24] sm:$0xf]
    %v725 = vld [vmem:[%s11 + $0x28] sm:$0xf]
    %v726 = vld [vmem:[%s11 + $0x2c] sm:$0xf]
    %v727 = vld [vmem:[%s11 + $0x30] sm:$0xf]
    %v728 = vld [vmem:[%s11 + $0x34] sm:$0xf]
    %v729 = vld [vmem:[%s11 + $0x38] sm:$0xf]
    %v730 = vld [vmem:[%s11 + $0x3c] sm:$0xf]
    %v731 = vld [vmem:[%s12] sm:$0x1]
    %v733 = vperm.slane %v731, 0
    %v751 = vunpack.c.l.b16 %v715
    %v752 = vunpack.c.l.b16 %v716
    %v753 = vunpack.c.l.b16 %v717
    %v754 = vunpack.c.l.b16 %v718
    %v755 = vunpack.c.l.b16 %v719
    %v756 = vunpack.c.l.b16 %v720
    %v757 = vunpack.c.l.b16 %v721
    %v758 = vunpack.c.l.b16 %v722
    %v759 = vunpack.c.l.b16 %v723
    %v760 = vunpack.c.l.b16 %v724
    %v761 = vunpack.c.l.b16 %v725
    %v762 = vunpack.c.l.b16 %v726
    %v763 = vunpack.c.l.b16 %v727
    %v764 = vunpack.c.l.b16 %v728
    %v765 = vunpack.c.l.b16 %v729
    %v766 = vunpack.c.l.b16 %v730
    %v767 = vpack.c.b16 %v752, %v751
    %v768 = vpack.c.b16 %v754, %v753
    %v769 = vpack.c.b16 %v756, %v755
    %v770 = vpack.c.b16 %v758, %v757
    %v771 = vpack.c.b16 %v760, %v759
    %v772 = vpack.c.b16 %v762, %v761
    %v773 = vpack.c.b16 %v764, %v763
    %v774 = vpack.c.b16 %v766, %v765
    %783 = vmatpush.bf16.msra.mxu0 %v774
    %784 = vmatpush.bf16.msra.mxu0 %v773
    %785 = vmatpush.bf16.msra.mxu0 %v772
    %786 = vmatpush.bf16.msra.mxu0 %v771
    %787 = vmatpush.bf16.msra.mxu0 %v770
    %788 = vmatpush.bf16.msra.mxu0 %v769
    %789 = vmatpush.bf16.msra.mxu0 %v768
    %790 = vmatpush.bf16.msra.mxu0 %v767
    %791 = vmatmul.bf16.gmra.mxu0 %v714
    %v792 = vpop.f32.mrf.mxu0
    %v793 = vadd.f32 %v733, %v792
    %v794 = vpop.f32.mrf.mxu0
    %795 = vdwg.mxu0
    %796 = vst [vmem:[#allocation2] sm:$0xff] %v793
    %797 = vst [vmem:[#allocation4] sm:$0xff] %v419
    // Predicated region
    $region54: #{pose_autoencoder_forward.1} parent=1 // pred_check
      _
    $region55: #{pose_autoencoder_forward.1} parent=1 // pred_check_branch
      %799 = sbr.rel (0) target = $region57
    $region56: #{pose_autoencoder_forward.1} parent=1 // pred_region
      %801 = vsyncadd [#allocation3], 0
      %s803 = sshll.u32 [#allocation2], 4
      %s804 = int_to_ptr.vmem [resolvable:$true] %s803
      %s805 = sshll.u32 %s13, 4
      %s806 = int_to_ptr.hbm [resolvable:$true] %s805
      %808 = dma.vmem_to_hbm [thread:$0]  %s804, 128, %s806, [#allocation3]
    $region57: #{pose_autoencoder_forward.1} parent=1 // pred_fallthru
      _
    // Predicated region
    $region58: #{pose_autoencoder_forward.1} parent=1 // pred_check
      _
    $region59: #{pose_autoencoder_forward.1} parent=1 // pred_check_branch
      %810 = sbr.rel (0) target = $region61
    $region60: #{pose_autoencoder_forward.1} parent=1 // pred_region
      %812 = vsyncadd [#allocation5], 0
      %s814 = sshll.u32 [#allocation4], 4
      %s815 = int_to_ptr.vmem [resolvable:$true] %s814
      %s816 = sshll.u32 %s14, 4
      %s817 = int_to_ptr.hbm [resolvable:$true] %s816
      %819 = dma.vmem_to_hbm [thread:$0]  %s815, 128, %s817, [#allocation5]
    $region61: #{pose_autoencoder_forward.1} parent=1 // pred_fallthru
      _
    // Predicated region
    $region62: #{pose_autoencoder_forward.1} parent=1 // pred_check
      _
    $region63: #{pose_autoencoder_forward.1} parent=1 // pred_check_branch
      %821 = sbr.rel (0) target = $region65
    $region64: #{pose_autoencoder_forward.1} parent=1 // pred_region
      %823 = dma.done [#allocation3], 128
    $region65: #{pose_autoencoder_forward.1} parent=1 // pred_fallthru
      _
    // Predicated region
    $region66: #{pose_autoencoder_forward.1} parent=1 // pred_check
      _
    $region67: #{pose_autoencoder_forward.1} parent=1 // pred_check_branch
      %825 = sbr.rel (0) target = $region69
    $region68: #{pose_autoencoder_forward.1} parent=1 // pred_region
      %827 = dma.done [#allocation5], 128
    $region69: #{pose_autoencoder_forward.1} parent=1 // pred_fallthru
      _
    %828 = vsyncpa [#allocation3], 1
    %829 = vsyncpa [#allocation5], 1

</llo_original>
